<compile_context>
chip_gen: v5e
topology: v5e:2x2
jax: 0.10.0
libtpu: 0.0.40
codegen_flags: <defaults>
</compile_context>

<pallas_src>
import functools

import jax
import jax.numpy as jnp
from jax import lax
from jax.experimental import pallas as pl
from jax.experimental.pallas import tpu as pltpu


# ---------------------------------------------------------------------------
# Tiling helper
# ---------------------------------------------------------------------------
def _choose_seq_tile(S, B, D, itemsize, budget_bytes):
    """Largest tS in {512, 256, 128} whose double-buffered s+t input working set
    (2 arrays x 2 buffers x B*tS*D*itemsize) fits the budget; full S if S is
    small.  128/256/512 are multiples of both 8 (sublane) and 128 (lane)."""
    tS = 512
    while tS > 128 and 2 * 2 * B * tS * D * itemsize > budget_bytes:
        tS //= 2
    if S <= tS:
        return S
    return tS


# ---------------------------------------------------------------------------
# Kernel 1: masked mean pooling of s_rep and t_rep (shared mask / denominator)
# ---------------------------------------------------------------------------
def _masked_pool_kernel(mask_ref, s_ref, t_ref, ps_ref, pt_ref,
                        s_acc, t_acc, den_acc, *, seq_len, seq_tile, ragged):
    si = pl.program_id(0)

    @pl.when(si == 0)
    def _init():
        s_acc[...] = jnp.zeros_like(s_acc)
        t_acc[...] = jnp.zeros_like(t_acc)
        den_acc[...] = jnp.zeros_like(den_acc)

    m = mask_ref[...].astype(jnp.float32)      # [B, 1, tS]  (cast in-kernel)
    xs = s_ref[...].astype(jnp.float32)        # [B, tS, D]
    xt = t_ref[...].astype(jnp.float32)        # [B, tS, D]

    if ragged:                                 # static: only for S % tS != 0
        start = si * seq_tile
        lane_pos = start + lax.broadcasted_iota(jnp.int32, m.shape, 2)
        m = jnp.where(lane_pos < seq_len, m, 0.0)
        sub_pos = start + lax.broadcasted_iota(jnp.int32, (1, seq_tile, 1), 1)
        inb = sub_pos < seq_len
        xs = jnp.where(inb, xs, 0.0)           # protect against OOB garbage
        xt = jnp.where(inb, xt, 0.0)

    # Masked sum as an MXU contraction over the sequence tile: [B,1,tS]x[B,tS,D]
    s_acc[...] += jnp.einsum('bks,bsd->bkd', m, xs,
                             preferred_element_type=jnp.float32)   # [B, 1, D]
    t_acc[...] += jnp.einsum('bks,bsd->bkd', m, xt,
                             preferred_element_type=jnp.float32)   # [B, 1, D]
    den_acc[...] += jnp.sum(m, axis=2, keepdims=True)              # [B, 1, 1]

    @pl.when(si == pl.num_programs(0) - 1)
    def _finalize():
        # all-zero mask rows give NaN (0 * inf), same as the PyTorch module
        inv = 1.0 / den_acc[...]
        ps_ref[...] = (s_acc[...] * inv).astype(ps_ref.dtype)
        pt_ref[...] = (t_acc[...] * inv).astype(pt_ref.dtype)


# ---------------------------------------------------------------------------
# Kernel 2: per-head pairwise angle matrices + smooth-L1, reduced to a scalar
# ---------------------------------------------------------------------------
def _angle_smooth_l1_kernel(s_ref, t_ref, o_ref, *, n_heads):
    _, B, _ = s_ref.shape                      # [H, B, d]

    def head_body(h, acc):
        sh = s_ref[h]                          # [B, d]   dynamic leading index
        th = t_ref[h]                          # [B, d]

        # diff[i, j, :] = x[j] - x[i]
        ds_ = sh[None, :, :] - sh[:, None, :]  # [B, B, d]
        dt_ = th[None, :, :] - th[:, None, :]  # [B, B, d]

        # F.normalize(p=2, eps=1e-12): x / max(||x||, 1e-12)
        ns = ds_ / jnp.maximum(
            jnp.sqrt(jnp.sum(ds_ * ds_, axis=-1, keepdims=True)), 1e-12)
        nt = dt_ / jnp.maximum(
            jnp.sqrt(jnp.sum(dt_ * dt_, axis=-1, keepdims=True)), 1e-12)

        # one batched contraction per head (anchor i is the batch dim)
        a_s = jnp.einsum('ijd,ikd->ijk', ns, ns,
                         preferred_element_type=jnp.float32)       # [B, B, B]
        a_t = jnp.einsum('ijd,ikd->ijk', nt, nt,
                         preferred_element_type=jnp.float32)       # [B, B, B]

        diff = a_s - a_t
        ad = jnp.abs(diff)
        l = jnp.where(ad < 1.0, 0.5 * diff * diff, ad - 0.5)       # beta = 1.0
        return acc + jnp.sum(l)                                    # scalar acc

    total = lax.fori_loop(0, n_heads, head_body, jnp.float32(0.0))
    o_ref[...] = jnp.reshape(total / jnp.float32(n_heads * B * B * B), (1, 1))


# ---------------------------------------------------------------------------
# Wrapper
# ---------------------------------------------------------------------------
def sample_loss(s_rep, t_rep, attention_mask, n_relation_heads):
    B, S, D = s_rep.shape
    H = n_relation_heads
    assert D % H == 0, "hidden dim must be divisible by n_relation_heads"
    d = D // H

    # VMEM budget: 48 MiB scoped limit works on v5e/v6e (128 MiB) and v7x
    # (64 MiB physical); tile picked so double-buffered inputs use ~half of it.
    vmem_limit = 48 * 1024 * 1024
    itemsize = jnp.dtype(s_rep.dtype).itemsize
    tS = _choose_seq_tile(S, B, D, itemsize, budget_bytes=vmem_limit // 2)
    nS = pl.cdiv(S, tS)
    ragged = (S % tS) != 0

    # lane-dense mask layout [B, 1, S]; native dtype (kernel casts)
    mask3 = attention_mask.reshape(B, 1, S)

    pool_kern = functools.partial(
        _masked_pool_kernel, seq_len=S, seq_tile=tS, ragged=ragged)

    pooled_s, pooled_t = pl.pallas_call(
        pool_kern,
        out_shape=(jax.ShapeDtypeStruct((B, 1, D), jnp.float32),
                   jax.ShapeDtypeStruct((B, 1, D), jnp.float32)),
        grid_spec=pltpu.PrefetchScalarGridSpec(
            num_scalar_prefetch=0,
            grid=(nS,),
            in_specs=[
                pl.BlockSpec((B, 1, tS), lambda si: (0, 0, si)),   # mask
                pl.BlockSpec((B, tS, D), lambda si: (0, si, 0)),   # s_rep
                pl.BlockSpec((B, tS, D), lambda si: (0, si, 0)),   # t_rep
            ],
            out_specs=[
                pl.BlockSpec((B, 1, D), lambda si: (0, 0, 0)),     # pooled s
                pl.BlockSpec((B, 1, D), lambda si: (0, 0, 0)),     # pooled t
            ],
            scratch_shapes=[
                pltpu.VMEM((B, 1, D), jnp.float32),   # s masked-sum accumulator
                pltpu.VMEM((B, 1, D), jnp.float32),   # t masked-sum accumulator
                pltpu.VMEM((B, 1, 1), jnp.float32),   # mask-count accumulator
            ],
        ),
        compiler_params=pltpu.CompilerParams(
            dimension_semantics=("arbitrary",),       # S is a reduction axis
            vmem_limit_bytes=vmem_limit,
        ),
    )(mask3, s_rep, t_rep)

    # head split in XLA (layout plumbing only): [B,1,D] -> [B,H,d] -> [H,B,d]
    def split_heads(p):
        return jnp.transpose(p.reshape(B, H, d), (1, 0, 2))

    s_heads = split_heads(pooled_s)
    t_heads = split_heads(pooled_t)

    loss2d = pl.pallas_call(
        functools.partial(_angle_smooth_l1_kernel, n_heads=H),
        out_shape=jax.ShapeDtypeStruct((1, 1), jnp.float32),
    )(s_heads, t_heads)
    return loss2d[0, 0]


# ---------------------------------------------------------------------------
# Pure-JAX reference (faithful translation of the PyTorch module)
# ---------------------------------------------------------------------------
def ref_sample_loss(s_rep, t_rep, attention_mask, n_relation_heads):
    m = attention_mask.astype(jnp.float32)

    def pool(x):
        return jnp.sum(x * m[:, :, None], axis=1) / jnp.sum(m, axis=1,
                                                            keepdims=True)

    def angle(x):
        B, D = x.shape
        H = n_relation_heads
        xh = jnp.transpose(x.reshape(B, H, D // H), (1, 0, 2))        # [H,B,d]
        diff = xh[:, None, :, :] - xh[:, :, None, :]                  # [H,B,B,d]
        nrm = diff / jnp.maximum(
            jnp.sqrt(jnp.sum(diff * diff, axis=-1, keepdims=True)), 1e-12)
        return jnp.einsum('hijd,hikd->hijk', nrm, nrm,
                          precision=jax.lax.Precision.HIGHEST)        # [H,B,B,B]

    sa = angle(pool(s_rep.astype(jnp.float32)))
    ta = angle(pool(t_rep.astype(jnp.float32)))
    diff = sa - ta
    absd = jnp.abs(diff)
    l = jnp.where(absd < 1.0, 0.5 * diff * diff, absd - 0.5)
    return jnp.mean(l)


if __name__ == "__main__":
    B, S, D = 8, 8, 32          # batch, seq, hidden
    H = 4                       # n_relation_heads  (head dim d = 8)

    key = jax.random.PRNGKey(0)
    k1, k2 = jax.random.split(key)
    s_rep = jax.random.normal(k1, (B, S, D), dtype=jnp.float32)
    t_rep = jax.random.normal(k2, (B, S, D), dtype=jnp.float32)

    # deterministic mask with varying valid lengths (each row >= 1 valid token)
    lens = (jnp.arange(B) % S) + 1
    attention_mask = (jnp.arange(S)[None, :] < lens[:, None]).astype(jnp.int32)

    loss = jax.block_until_ready(sample_loss(s_rep, t_rep, attention_mask, H))
    ref = jax.block_until_ready(ref_sample_loss(s_rep, t_rep, attention_mask, H))

    # Tolerance leaves headroom for MXU f32 pass precision inside the kernel
    # vs. the HIGHEST-precision XLA reference; structural bugs are ~100x larger.
    assert jnp.allclose(loss, ref, rtol=5e-3, atol=5e-4), (loss, ref)

    print("KERNEL_OK")
</pallas_src>

<mosaic_0001>
module attributes {stable_mosaic.version = 11 : i64} {
  func.func @_masked_pool_kernel(%arg0: i32, %arg1: memref<8x1x8xi32, #tpu.memory_space<vmem>>, %arg2: memref<8x8x32xf32, #tpu.memory_space<vmem>>, %arg3: memref<8x8x32xf32, #tpu.memory_space<vmem>>, %arg4: memref<8x1x32xf32, #tpu.memory_space<vmem>>, %arg5: memref<8x1x32xf32, #tpu.memory_space<vmem>>, %arg6: memref<8x1x32xf32, #tpu.memory_space<vmem>>, %arg7: memref<8x1x32xf32, #tpu.memory_space<vmem>>, %arg8: memref<8x1x1xf32, #tpu.memory_space<vmem>>) attributes {dimension_semantics = [#tpu.dimension_semantics<arbitrary>], iteration_bounds = array<i64: 1>, scalar_prefetch = 0 : i64, scratch_operands = 3 : i64, tpu.core_type = #tpu.core_type<tc>, window_params = [{transform_indices = @transform_0, window_bounds = array<i64: 8, 1, 8>}, {transform_indices = @transform_1, window_bounds = array<i64: 8, 8, 32>}, {transform_indices = @transform_2, window_bounds = array<i64: 8, 8, 32>}, {pipeline_mode = #tpu.pipeline_mode<synchronous>, transform_indices = @transform_3, window_bounds = array<i64: 8, 1, 32>}, {pipeline_mode = #tpu.pipeline_mode<synchronous>, transform_indices = @transform_4, window_bounds = array<i64: 8, 1, 32>}]} {
    %c0_i32 = arith.constant 0 : i32
    %0 = arith.cmpi eq, %arg0, %c0_i32 : i32
    %1 = arith.extui %0 : i1 to i32
    %c0_i32_0 = arith.constant 0 : i32
    %2 = arith.cmpi ne, %1, %c0_i32_0 : i32
    scf.if %2 {
      %cst_31 = arith.constant 0.000000e+00 : f32
      %23 = vector.broadcast %cst_31 : f32 to vector<8x1x32xf32>
      %c0_32 = arith.constant 0 : index
      %c0_33 = arith.constant 0 : index
      %c0_34 = arith.constant 0 : index
      %24 = vector.load %arg6[%c0_32, %c0_33, %c0_34] : memref<8x1x32xf32, #tpu.memory_space<vmem>>, vector<8x1x32xf32>
      tpu.vector_store %arg6[%c0_32, %c0_33, %c0_34], %23 {strides = array<i32>} : memref<8x1x32xf32, #tpu.memory_space<vmem>>, vector<8x1x32xf32>,
      %cst_35 = arith.constant 0.000000e+00 : f32
      %25 = vector.broadcast %cst_35 : f32 to vector<8x1x32xf32>
      %c0_36 = arith.constant 0 : index
      %c0_37 = arith.constant 0 : index
      %c0_38 = arith.constant 0 : index
      %26 = vector.load %arg7[%c0_36, %c0_37, %c0_38] : memref<8x1x32xf32, #tpu.memory_space<vmem>>, vector<8x1x32xf32>
      tpu.vector_store %arg7[%c0_36, %c0_37, %c0_38], %25 {strides = array<i32>} : memref<8x1x32xf32, #tpu.memory_space<vmem>>, vector<8x1x32xf32>,
      %cst_39 = arith.constant 0.000000e+00 : f32
      %27 = vector.broadcast %cst_39 : f32 to vector<8x1x1xf32>
      %c0_40 = arith.constant 0 : index
      %c0_41 = arith.constant 0 : index
      %c0_42 = arith.constant 0 : index
      %28 = vector.load %arg8[%c0_40, %c0_41, %c0_42] : memref<8x1x1xf32, #tpu.memory_space<vmem>>, vector<8x1x1xf32>
      tpu.vector_store %arg8[%c0_40, %c0_41, %c0_42], %27 {strides = array<i32>} : memref<8x1x1xf32, #tpu.memory_space<vmem>>, vector<8x1x1xf32>,
    } else {
    }
    %c0 = arith.constant 0 : index
    %c0_1 = arith.constant 0 : index
    %c0_2 = arith.constant 0 : index
    %3 = vector.load %arg1[%c0, %c0_1, %c0_2] : memref<8x1x8xi32, #tpu.memory_space<vmem>>, vector<8x1x8xi32>
    %4 = arith.sitofp %3 : vector<8x1x8xi32> to vector<8x1x8xf32>
    %c0_3 = arith.constant 0 : index
    %c0_4 = arith.constant 0 : index
    %c0_5 = arith.constant 0 : index
    %5 = vector.load %arg2[%c0_3, %c0_4, %c0_5] : memref<8x8x32xf32, #tpu.memory_space<vmem>>, vector<8x8x32xf32>
    %c0_6 = arith.constant 0 : index
    %c0_7 = arith.constant 0 : index
    %c0_8 = arith.constant 0 : index
    %6 = vector.load %arg3[%c0_6, %c0_7, %c0_8] : memref<8x8x32xf32, #tpu.memory_space<vmem>>, vector<8x8x32xf32>
    %c0_9 = arith.constant 0 : index
    %c0_10 = arith.constant 0 : index
    %c0_11 = arith.constant 0 : index
    %7 = vector.load %arg6[%c0_9, %c0_10, %c0_11] : memref<8x1x32xf32, #tpu.memory_space<vmem>>, vector<8x1x32xf32>
    "tpu.trace_start"() <{level = 10 : i32, message = "bks,bsd->bkd"}> : () -> ()
    %cst = arith.constant dense<0.000000e+00> : vector<8x1x32xf32>
    %8 = tpu.matmul %4, %5, %cst {dimension_numbers = #tpu.dot_dimension_numbers<[2], [1], [1], [2], [0, 0, 0, 1, 1, 2], [0], [0]>} : vector<8x1x8xf32>, vector<8x8x32xf32>, vector<8x1x32xf32> -> vector<8x1x32xf32>
    "tpu.trace_stop"() : () -> ()
    %9 = arith.addf %7, %8 : vector<8x1x32xf32>
    %c0_12 = arith.constant 0 : index
    %c0_13 = arith.constant 0 : index
    %c0_14 = arith.constant 0 : index
    %10 = vector.load %arg6[%c0_12, %c0_13, %c0_14] : memref<8x1x32xf32, #tpu.memory_space<vmem>>, vector<8x1x32xf32>
    tpu.vector_store %arg6[%c0_12, %c0_13, %c0_14], %9 {strides = array<i32>} : memref<8x1x32xf32, #tpu.memory_space<vmem>>, vector<8x1x32xf32>,
    %c0_15 = arith.constant 0 : index
    %c0_16 = arith.constant 0 : index
    %c0_17 = arith.constant 0 : index
    %11 = vector.load %arg7[%c0_15, %c0_16, %c0_17] : memref<8x1x32xf32, #tpu.memory_space<vmem>>, vector<8x1x32xf32>
    "tpu.trace_start"() <{level = 10 : i32, message = "bks,bsd->bkd"}> : () -> ()
    %cst_18 = arith.constant dense<0.000000e+00> : vector<8x1x32xf32>
    %12 = tpu.matmul %4, %6, %cst_18 {dimension_numbers = #tpu.dot_dimension_numbers<[2], [1], [1], [2], [0, 0, 0, 1, 1, 2], [0], [0]>} : vector<8x1x8xf32>, vector<8x8x32xf32>, vector<8x1x32xf32> -> vector<8x1x32xf32>
    "tpu.trace_stop"() : () -> ()
    %13 = arith.addf %11, %12 : vector<8x1x32xf32>
    %c0_19 = arith.constant 0 : index
    %c0_20 = arith.constant 0 : index
    %c0_21 = arith.constant 0 : index
    %14 = vector.load %arg7[%c0_19, %c0_20, %c0_21] : memref<8x1x32xf32, #tpu.memory_space<vmem>>, vector<8x1x32xf32>
    tpu.vector_store %arg7[%c0_19, %c0_20, %c0_21], %13 {strides = array<i32>} : memref<8x1x32xf32, #tpu.memory_space<vmem>>, vector<8x1x32xf32>,
    %c0_22 = arith.constant 0 : index
    %c0_23 = arith.constant 0 : index
    %c0_24 = arith.constant 0 : index
    %15 = vector.load %arg8[%c0_22, %c0_23, %c0_24] : memref<8x1x1xf32, #tpu.memory_space<vmem>>, vector<8x1x1xf32>
    %cst_25 = arith.constant dense<0.000000e+00> : vector<8x1xf32>
    %16 = vector.multi_reduction <add>, %4, %cst_25 [2] : vector<8x1x8xf32> to vector<8x1xf32>
    %17 = vector.shape_cast %16 : vector<8x1xf32> to vector<8x1x1xf32>
    %18 = arith.addf %15, %17 : vector<8x1x1xf32>
    %c0_26 = arith.constant 0 : index
    %c0_27 = arith.constant 0 : index
    %c0_28 = arith.constant 0 : index
    %19 = vector.load %arg8[%c0_26, %c0_27, %c0_28] : memref<8x1x1xf32, #tpu.memory_space<vmem>>, vector<8x1x1xf32>
    tpu.vector_store %arg8[%c0_26, %c0_27, %c0_28], %18 {strides = array<i32>} : memref<8x1x1xf32, #tpu.memory_space<vmem>>, vector<8x1x1xf32>,
    %c0_i32_29 = arith.constant 0 : i32
    %20 = arith.cmpi eq, %arg0, %c0_i32_29 : i32
    %21 = arith.extui %20 : i1 to i32
    %c0_i32_30 = arith.constant 0 : i32
    %22 = arith.cmpi ne, %21, %c0_i32_30 : i32
    scf.if %22 {
      %c0_31 = arith.constant 0 : index
      %c0_32 = arith.constant 0 : index
      %c0_33 = arith.constant 0 : index
      %23 = vector.load %arg8[%c0_31, %c0_32, %c0_33] : memref<8x1x1xf32, #tpu.memory_space<vmem>>, vector<8x1x1xf32>
      %cst_34 = arith.constant 1.000000e+00 : f32
      %24 = vector.broadcast %cst_34 : f32 to vector<8x1x1xf32>
      %25 = arith.divf %24, %23 : vector<8x1x1xf32>
      %c0_35 = arith.constant 0 : index
      %c0_36 = arith.constant 0 : index
      %c0_37 = arith.constant 0 : index
      %26 = vector.load %arg6[%c0_35, %c0_36, %c0_37] : memref<8x1x32xf32, #tpu.memory_space<vmem>>, vector<8x1x32xf32>
      %27 = vector.broadcast %25 : vector<8x1x1xf32> to vector<8x1x32xf32>
      %28 = arith.mulf %26, %27 : vector<8x1x32xf32>
      %c0_38 = arith.constant 0 : index
      %c0_39 = arith.constant 0 : index
      %c0_40 = arith.constant 0 : index
      %29 = vector.load %arg4[%c0_38, %c0_39, %c0_40] : memref<8x1x32xf32, #tpu.memory_space<vmem>>, vector<8x1x32xf32>
      tpu.vector_store %arg4[%c0_38, %c0_39, %c0_40], %28 {strides = array<i32>} : memref<8x1x32xf32, #tpu.memory_space<vmem>>, vector<8x1x32xf32>,
      %c0_41 = arith.constant 0 : index
      %c0_42 = arith.constant 0 : index
      %c0_43 = arith.constant 0 : index
      %30 = vector.load %arg7[%c0_41, %c0_42, %c0_43] : memref<8x1x32xf32, #tpu.memory_space<vmem>>, vector<8x1x32xf32>
      %31 = vector.broadcast %25 : vector<8x1x1xf32> to vector<8x1x32xf32>
      %32 = arith.mulf %30, %31 : vector<8x1x32xf32>
      %c0_44 = arith.constant 0 : index
      %c0_45 = arith.constant 0 : index
      %c0_46 = arith.constant 0 : index
      %33 = vector.load %arg5[%c0_44, %c0_45, %c0_46] : memref<8x1x32xf32, #tpu.memory_space<vmem>>, vector<8x1x32xf32>
      tpu.vector_store %arg5[%c0_44, %c0_45, %c0_46], %32 {strides = array<i32>} : memref<8x1x32xf32, #tpu.memory_space<vmem>>, vector<8x1x32xf32>,
    } else {
    }
    return
  }
  func.func @transform_0(%arg0: i32) -> (i32, i32, i32) {
    %c0_i32 = arith.constant 0 : i32
    %c0_i32_0 = arith.constant 0 : i32
    %c0_i32_1 = arith.constant 0 : i32
    return %c0_i32, %c0_i32_0, %arg0 : i32, i32, i32
  }
  func.func @transform_1(%arg0: i32) -> (i32, i32, i32) {
    %c0_i32 = arith.constant 0 : i32
    %c0_i32_0 = arith.constant 0 : i32
    %c0_i32_1 = arith.constant 0 : i32
    return %c0_i32, %arg0, %c0_i32_0 : i32, i32, i32
  }
  func.func @transform_2(%arg0: i32) -> (i32, i32, i32) {
    %c0_i32 = arith.constant 0 : i32
    %c0_i32_0 = arith.constant 0 : i32
    %c0_i32_1 = arith.constant 0 : i32
    return %c0_i32, %arg0, %c0_i32_0 : i32, i32, i32
  }
  func.func @transform_3(%arg0: i32) -> (i32, i32, i32) {
    %c0_i32 = arith.constant 0 : i32
    %c0_i32_0 = arith.constant 0 : i32
    %c0_i32_1 = arith.constant 0 : i32
    %c0_i32_2 = arith.constant 0 : i32
    return %c0_i32, %c0_i32_0, %c0_i32_1 : i32, i32, i32
  }
  func.func @transform_4(%arg0: i32) -> (i32, i32, i32) {
    %c0_i32 = arith.constant 0 : i32
    %c0_i32_0 = arith.constant 0 : i32
    %c0_i32_1 = arith.constant 0 : i32
    %c0_i32_2 = arith.constant 0 : i32
    return %c0_i32, %c0_i32_0, %c0_i32_1 : i32, i32, i32
  }
}

</mosaic_0001>

<llo_original>
// kernel: tpu_custom_call.1
$region0: #{tpu_custom_call.1}
  #allocation0 [shape = 'u32[]', space=smem, size = 0x4, offset = 0x4, fixed_abs, tag = 'smem constant byte address 0x4 - core index']
  #allocation1 [shape = 'u32[72,128]{1,0:T(1,128)}', space=vmem, size = 0x9000, scoped, tag = 'internal scratch']
  #allocation2 [shape = 'f32[8,1,32]{2,1,0:T(1,128)}', space=vmem, size = 0x1000, scoped, tag = 'scratch operand']
  #allocation3 [shape = 'f32[8,1,32]{2,1,0:T(1,128)}', space=vmem, size = 0x1000, scoped, tag = 'scratch operand']
  #allocation4 [shape = 'f32[8,1,1]{2,1,0:T(1,128)}', space=vmem, size = 0x1000, scoped, tag = 'scratch operand']
  %s0 = inlined_call_operand.hbm [shape: s32[8,1,8], index: 0, kind: input, shape index: {}]
  %s1 = inlined_call_operand.hbm [shape: f32[8,8,32], index: 1, kind: input, shape index: {}]
  %s2 = inlined_call_operand.hbm [shape: f32[8,8,32], index: 2, kind: input, shape index: {}]
  %s3 = inlined_call_operand.hbm [shape: f32[8,1,32], index: 3, kind: output, shape index: {0}]
  %s4 = inlined_call_operand.hbm [shape: f32[8,1,32], index: 4, kind: output, shape index: {1}]
  %5 = xla_tuple %s3, %s4
  %s6 = sld [smem:[#allocation0]]
  $region50: #{tpu_custom_call.1} parent=0
    _
  %s8 = ssub.s32 1, %s6
  %s9 = scalar_select 0, %s8, %s6
  $region1: #{tpu_custom_call.1} parent=0
    #allocation5 [shape = 'u8[4096]{0}', space=vmem, size = 0x1000, scoped, tag = 'input window, operand 0, single buffered']
    #allocation6 [shape = 's32[1]{0}', space=sflag, size = 0x4, scoped, tag = 'scoped memory for tpu_custom_call.1']
    #allocation7 [shape = 's32[1]{0}', space=sflag, size = 0x4, scoped, tag = 'scoped memory for tpu_custom_call.1']
    #allocation8 [shape = 'u8[32768]{0}', space=vmem, size = 0x8000, scoped, tag = 'input window, operand 1, single buffered']
    #allocation9 [shape = 's32[1]{0}', space=sflag, size = 0x4, scoped, tag = 'scoped memory for tpu_custom_call.1']
    #allocation10 [shape = 'u8[32768]{0}', space=vmem, size = 0x8000, scoped, tag = 'input window, operand 2, single buffered']
    #allocation11 [shape = 'u8[4096]{0}', space=vmem, size = 0x1000, scoped, tag = 'output window, operand 0, single buffered']
    #allocation12 [shape = 'u8[4096]{0}', space=vmem, size = 0x1000, scoped, tag = 'output window, operand 1, single buffered']
    #allocation13 [shape = 's32[1]{0}', space=sflag, size = 0x4, scoped, tag = 'scoped memory for tpu_custom_call.1']
    %10 = vsyncpa [#allocation6], 0
    %11 = vsyncpa [#allocation9], 0
    %12 = vsyncpa [#allocation7], 0
    %13 = vsyncpa [#allocation13], 0
    // Predicated region
    $region2: #{tpu_custom_call.1} parent=1 // pred_check
      _
    $region3: #{tpu_custom_call.1} parent=1 // pred_check_branch
      %15 = sbr.rel (0) target = $region5
    $region4: #{tpu_custom_call.1} parent=1 // pred_region
      %17 = vsyncadd [#allocation6], 0
      %s18 = sshll.u32 %s0, 4
      %s19 = int_to_ptr.hbm [resolvable:$true] %s18
      %s20 = sshll.u32 [#allocation5], 4
      %s21 = int_to_ptr.vmem [resolvable:$true] %s20
      %26 = dma.hbm_to_vmem [thread:$0]  %s19, 128, %s21, [#allocation6], 16, 16, 1
    $region5: #{tpu_custom_call.1} parent=1 // pred_fallthru
      _
    // Predicated region
    $region6: #{tpu_custom_call.1} parent=1 // pred_check
      _
    $region7: #{tpu_custom_call.1} parent=1 // pred_check_branch
      %28 = sbr.rel (0) target = $region9
    $region8: #{tpu_custom_call.1} parent=1 // pred_region
      %30 = vsyncadd [#allocation9], 0
      %s31 = sshll.u32 %s1, 4
      %s32 = int_to_ptr.hbm [resolvable:$true] %s31
      %s33 = sshll.u32 [#allocation8], 4
      %s34 = int_to_ptr.vmem [resolvable:$true] %s33
      %39 = dma.hbm_to_vmem [thread:$0]  %s32, 1024, %s34, [#allocation9], 128, 128, 8
    $region9: #{tpu_custom_call.1} parent=1 // pred_fallthru
      _
    // Predicated region
    $region10: #{tpu_custom_call.1} parent=1 // pred_check
      _
    $region11: #{tpu_custom_call.1} parent=1 // pred_check_branch
      %41 = sbr.rel (0) target = $region13
    $region12: #{tpu_custom_call.1} parent=1 // pred_region
      %43 = vsyncadd [#allocation9], 0
      %s44 = sshll.u32 %s2, 4
      %s45 = int_to_ptr.hbm [resolvable:$true] %s44
      %s46 = sshll.u32 [#allocation10], 4
      %s47 = int_to_ptr.vmem [resolvable:$true] %s46
      %52 = dma.hbm_to_vmem [thread:$0]  %s45, 1024, %s47, [#allocation9], 128, 128, 8
    $region13: #{tpu_custom_call.1} parent=1 // pred_fallthru
      _
    // Predicated region
    $region14: #{tpu_custom_call.1} parent=1 // pred_check
      _
    $region15: #{tpu_custom_call.1} parent=1 // pred_check_branch
      %54 = sbr.rel (0) target = $region17
    $region16: #{tpu_custom_call.1} parent=1 // pred_region
      %56 = dma.done [#allocation6], 128
    $region17: #{tpu_custom_call.1} parent=1 // pred_fallthru
      _
    // Predicated region
    $region18: #{tpu_custom_call.1} parent=1 // pred_check
      _
    $region19: #{tpu_custom_call.1} parent=1 // pred_check_branch
      %58 = sbr.rel (0) target = $region21
    $region20: #{tpu_custom_call.1} parent=1 // pred_region
      %60 = dma.done [#allocation9], 1024
    $region21: #{tpu_custom_call.1} parent=1 // pred_fallthru
      _
    // Predicated region
    $region22: #{tpu_custom_call.1} parent=1 // pred_check
      _
    $region23: #{tpu_custom_call.1} parent=1 // pred_check_branch
      %62 = sbr.rel (0) target = $region25
    $region24: #{tpu_custom_call.1} parent=1 // pred_region
      %64 = dma.done [#allocation9], 1024
    $region25: #{tpu_custom_call.1} parent=1 // pred_fallthru
      _
    %p65 = scmp.eq.s32.totalorder 0, 0
    // Predicated region
    $region26: #{tpu_custom_call.1} parent=1 // pred_check
      %p66 = pneg %p65
    $region27: #{tpu_custom_call.1} parent=1 // pred_check_branch
      %68 = sbr.rel (%p66) target = $region29
    $region28: #{tpu_custom_call.1} parent=1 // pred_region
      %vm69 = vcmask 253952
      %70 = vst.msk [vmem:[#allocation2] sm:$0x1] %vm69, 0.0
      %71 = vst.msk [vmem:[#allocation2 + $0x1] sm:$0x1] %vm69, 0.0
      %72 = vst.msk [vmem:[#allocation2 + $0x2] sm:$0x1] %vm69, 0.0
      %73 = vst.msk [vmem:[#allocation2 + $0x3] sm:$0x1] %vm69, 0.0
      %74 = vst.msk [vmem:[#allocation2 + $0x4] sm:$0x1] %vm69, 0.0
      %75 = vst.msk [vmem:[#allocation2 + $0x5] sm:$0x1] %vm69, 0.0
      %76 = vst.msk [vmem:[#allocation2 + $0x6] sm:$0x1] %vm69, 0.0
      %77 = vst.msk [vmem:[#allocation2 + $0x7] sm:$0x1] %vm69, 0.0
      %78 = vst.msk [vmem:[#allocation3] sm:$0x1] %vm69, 0.0
      %79 = vst.msk [vmem:[#allocation3 + $0x1] sm:$0x1] %vm69, 0.0
      %80 = vst.msk [vmem:[#allocation3 + $0x2] sm:$0x1] %vm69, 0.0
      %81 = vst.msk [vmem:[#allocation3 + $0x3] sm:$0x1] %vm69, 0.0
      %82 = vst.msk [vmem:[#allocation3 + $0x4] sm:$0x1] %vm69, 0.0
      %83 = vst.msk [vmem:[#allocation3 + $0x5] sm:$0x1] %vm69, 0.0
      %84 = vst.msk [vmem:[#allocation3 + $0x6] sm:$0x1] %vm69, 0.0
      %85 = vst.msk [vmem:[#allocation3 + $0x7] sm:$0x1] %vm69, 0.0
      %vm86 = vcmask 0
      %87 = vst.msk [vmem:[#allocation4] sm:$0x1] %vm86, 0.0
      %88 = vst.msk [vmem:[#allocation4 + $0x1] sm:$0x1] %vm86, 0.0
      %89 = vst.msk [vmem:[#allocation4 + $0x2] sm:$0x1] %vm86, 0.0
      %90 = vst.msk [vmem:[#allocation4 + $0x3] sm:$0x1] %vm86, 0.0
      %91 = vst.msk [vmem:[#allocation4 + $0x4] sm:$0x1] %vm86, 0.0
      %92 = vst.msk [vmem:[#allocation4 + $0x5] sm:$0x1] %vm86, 0.0
      %93 = vst.msk [vmem:[#allocation4 + $0x6] sm:$0x1] %vm86, 0.0
      %94 = vst.msk [vmem:[#allocation4 + $0x7] sm:$0x1] %vm86, 0.0
    $region29: #{tpu_custom_call.1} parent=1 // pred_fallthru
      _
    %v95 = vld [vmem:[#allocation5] sm:$0x1]
    %v96 = vld [vmem:[#allocation5 + $0x1] sm:$0x1]
    %v97 = vld [vmem:[#allocation5 + $0x2] sm:$0x1]
    %v98 = vld [vmem:[#allocation5 + $0x3] sm:$0x1]
    %v99 = vld [vmem:[#allocation5 + $0x4] sm:$0x1]
    %v100 = vld [vmem:[#allocation5 + $0x5] sm:$0x1]
    %v101 = vld [vmem:[#allocation5 + $0x6] sm:$0x1]
    %v102 = vld [vmem:[#allocation5 + $0x7] sm:$0x1]
    %v103 = vcvt.s32.f32 %v95
    %v104 = vcvt.s32.f32 %v96
    %v105 = vcvt.s32.f32 %v97
    %v106 = vcvt.s32.f32 %v98
    %v107 = vcvt.s32.f32 %v99
    %v108 = vcvt.s32.f32 %v100
    %v109 = vcvt.s32.f32 %v101
    %v110 = vcvt.s32.f32 %v102
    %v111 = vld [vmem:[#allocation8] sm:$0xff]
    %v112 = vld [vmem:[#allocation8 + $0x8] sm:$0xff]
    %v113 = vld [vmem:[#allocation8 + $0x10] sm:$0xff]
    %v114 = vld [vmem:[#allocation8 + $0x18] sm:$0xff]
    %v115 = vld [vmem:[#allocation8 + $0x20] sm:$0xff]
    %v116 = vld [vmem:[#allocation8 + $0x28] sm:$0xff]
    %v117 = vld [vmem:[#allocation8 + $0x30] sm:$0xff]
    %v118 = vld [vmem:[#allocation8 + $0x38] sm:$0xff]
    %v119 = vld [vmem:[#allocation10] sm:$0xff]
    %v120 = vld [vmem:[#allocation10 + $0x8] sm:$0xff]
    %v121 = vld [vmem:[#allocation10 + $0x10] sm:$0xff]
    %v122 = vld [vmem:[#allocation10 + $0x18] sm:$0xff]
    %v123 = vld [vmem:[#allocation10 + $0x20] sm:$0xff]
    %v124 = vld [vmem:[#allocation10 + $0x28] sm:$0xff]
    %v125 = vld [vmem:[#allocation10 + $0x30] sm:$0xff]
    %v126 = vld [vmem:[#allocation10 + $0x38] sm:$0xff]
    %v127 = vld [vmem:[#allocation2] sm:$0x1]
    %v128 = vld [vmem:[#allocation2 + $0x1] sm:$0x1]
    %v129 = vld [vmem:[#allocation2 + $0x2] sm:$0x1]
    %v130 = vld [vmem:[#allocation2 + $0x3] sm:$0x1]
    %v131 = vld [vmem:[#allocation2 + $0x4] sm:$0x1]
    %v132 = vld [vmem:[#allocation2 + $0x5] sm:$0x1]
    %v133 = vld [vmem:[#allocation2 + $0x6] sm:$0x1]
    %v134 = vld [vmem:[#allocation2 + $0x7] sm:$0x1]
    %vm135 = vcmask 64512
    %v137 = vsel %vm135, %v103, 0
    %139 = vmatpush.msra.mxu0 0.0
    %140 = vmatpush.msra.mxu0 0.0
    %141 = vmatpush.msra.mxu0 0.0
    %142 = vmatpush.msra.mxu0 0.0
    %143 = vmatpush.msra.mxu0 0.0
    %144 = vmatpush.msra.mxu0 0.0
    %145 = vmatpush.msra.mxu0 0.0
    %146 = vmatpush.msra.mxu0 0.0
    %147 = vmatpush.msra.mxu0 0.0
    %148 = vmatpush.msra.mxu0 0.0
    %149 = vmatpush.msra.mxu0 0.0
    %150 = vmatpush.msra.mxu0 0.0
    %151 = vmatpush.msra.mxu0 0.0
    %152 = vmatpush.msra.mxu0 0.0
    %153 = vmatpush.msra.mxu0 0.0
    %154 = vmatpush.msra.mxu0 %v111
    %155 = vmatmul.f32.gmra.mxu0 %v137
    %v156 = vpop.f32.mrf.mxu0
    %v157 = vadd.f32 0.0, %v156
    %158 = vdwg.mxu0
    %v160 = vsel %vm135, %v104, 0
    %162 = vmatpush.msra.mxu0 0.0
    %163 = vmatpush.msra.mxu0 0.0
    %164 = vmatpush.msra.mxu0 0.0
    %165 = vmatpush.msra.mxu0 0.0
    %166 = vmatpush.msra.mxu0 0.0
    %167 = vmatpush.msra.mxu0 0.0
    %168 = vmatpush.msra.mxu0 0.0
    %169 = vmatpush.msra.mxu0 0.0
    %170 = vmatpush.msra.mxu0 0.0
    %171 = vmatpush.msra.mxu0 0.0
    %172 = vmatpush.msra.mxu0 0.0
    %173 = vmatpush.msra.mxu0 0.0
    %174 = vmatpush.msra.mxu0 0.0
    %175 = vmatpush.msra.mxu0 0.0
    %176 = vmatpush.msra.mxu0 0.0
    %177 = vmatpush.msra.mxu0 %v112
    %178 = vmatmul.f32.gmra.mxu0 %v160
    %v179 = vpop.f32.mrf.mxu0
    %v180 = vadd.f32 0.0, %v179
    %181 = vdwg.mxu0
    %v183 = vsel %vm135, %v105, 0
    %185 = vmatpush.msra.mxu0 0.0
    %186 = vmatpush.msra.mxu0 0.0
    %187 = vmatpush.msra.mxu0 0.0
    %188 = vmatpush.msra.mxu0 0.0
    %189 = vmatpush.msra.mxu0 0.0
    %190 = vmatpush.msra.mxu0 0.0
    %191 = vmatpush.msra.mxu0 0.0
    %192 = vmatpush.msra.mxu0 0.0
    %193 = vmatpush.msra.mxu0 0.0
    %194 = vmatpush.msra.mxu0 0.0
    %195 = vmatpush.msra.mxu0 0.0
    %196 = vmatpush.msra.mxu0 0.0
    %197 = vmatpush.msra.mxu0 0.0
    %198 = vmatpush.msra.mxu0 0.0
    %199 = vmatpush.msra.mxu0 0.0
    %200 = vmatpush.msra.mxu0 %v113
    %201 = vmatmul.f32.gmra.mxu0 %v183
    %v202 = vpop.f32.mrf.mxu0
    %v203 = vadd.f32 0.0, %v202
    %204 = vdwg.mxu0
    %v206 = vsel %vm135, %v106, 0
    %208 = vmatpush.msra.mxu0 0.0
    %209 = vmatpush.msra.mxu0 0.0
    %210 = vmatpush.msra.mxu0 0.0
    %211 = vmatpush.msra.mxu0 0.0
    %212 = vmatpush.msra.mxu0 0.0
    %213 = vmatpush.msra.mxu0 0.0
    %214 = vmatpush.msra.mxu0 0.0
    %215 = vmatpush.msra.mxu0 0.0
    %216 = vmatpush.msra.mxu0 0.0
    %217 = vmatpush.msra.mxu0 0.0
    %218 = vmatpush.msra.mxu0 0.0
    %219 = vmatpush.msra.mxu0 0.0
    %220 = vmatpush.msra.mxu0 0.0
    %221 = vmatpush.msra.mxu0 0.0
    %222 = vmatpush.msra.mxu0 0.0
    %223 = vmatpush.msra.mxu0 %v114
    %224 = vmatmul.f32.gmra.mxu0 %v206
    %v225 = vpop.f32.mrf.mxu0
    %v226 = vadd.f32 0.0, %v225
    %227 = vdwg.mxu0
    %v229 = vsel %vm135, %v107, 0
    %231 = vmatpush.msra.mxu0 0.0
    %232 = vmatpush.msra.mxu0 0.0
    %233 = vmatpush.msra.mxu0 0.0
    %234 = vmatpush.msra.mxu0 0.0
    %235 = vmatpush.msra.mxu0 0.0
    %236 = vmatpush.msra.mxu0 0.0
    %237 = vmatpush.msra.mxu0 0.0
    %238 = vmatpush.msra.mxu0 0.0
    %239 = vmatpush.msra.mxu0 0.0
    %240 = vmatpush.msra.mxu0 0.0
    %241 = vmatpush.msra.mxu0 0.0
    %242 = vmatpush.msra.mxu0 0.0
    %243 = vmatpush.msra.mxu0 0.0
    %244 = vmatpush.msra.mxu0 0.0
    %245 = vmatpush.msra.mxu0 0.0
    %246 = vmatpush.msra.mxu0 %v115
    %247 = vmatmul.f32.gmra.mxu0 %v229
    %v248 = vpop.f32.mrf.mxu0
    %v249 = vadd.f32 0.0, %v248
    %250 = vdwg.mxu0
    %v252 = vsel %vm135, %v108, 0
    %254 = vmatpush.msra.mxu0 0.0
    %255 = vmatpush.msra.mxu0 0.0
    %256 = vmatpush.msra.mxu0 0.0
    %257 = vmatpush.msra.mxu0 0.0
    %258 = vmatpush.msra.mxu0 0.0
    %259 = vmatpush.msra.mxu0 0.0
    %260 = vmatpush.msra.mxu0 0.0
    %261 = vmatpush.msra.mxu0 0.0
    %262 = vmatpush.msra.mxu0 0.0
    %263 = vmatpush.msra.mxu0 0.0
    %264 = vmatpush.msra.mxu0 0.0
    %265 = vmatpush.msra.mxu0 0.0
    %266 = vmatpush.msra.mxu0 0.0
    %267 = vmatpush.msra.mxu0 0.0
    %268 = vmatpush.msra.mxu0 0.0
    %269 = vmatpush.msra.mxu0 %v116
    %270 = vmatmul.f32.gmra.mxu0 %v252
    %v271 = vpop.f32.mrf.mxu0
    %v272 = vadd.f32 0.0, %v271
    %273 = vdwg.mxu0
    %v275 = vsel %vm135, %v109, 0
    %277 = vmatpush.msra.mxu0 0.0
    %278 = vmatpush.msra.mxu0 0.0
    %279 = vmatpush.msra.mxu0 0.0
    %280 = vmatpush.msra.mxu0 0.0
    %281 = vmatpush.msra.mxu0 0.0
    %282 = vmatpush.msra.mxu0 0.0
    %283 = vmatpush.msra.mxu0 0.0
    %284 = vmatpush.msra.mxu0 0.0
    %285 = vmatpush.msra.mxu0 0.0
    %286 = vmatpush.msra.mxu0 0.0
    %287 = vmatpush.msra.mxu0 0.0
    %288 = vmatpush.msra.mxu0 0.0
    %289 = vmatpush.msra.mxu0 0.0
    %290 = vmatpush.msra.mxu0 0.0
    %291 = vmatpush.msra.mxu0 0.0
    %292 = vmatpush.msra.mxu0 %v117
    %293 = vmatmul.f32.gmra.mxu0 %v275
    %v294 = vpop.f32.mrf.mxu0
    %v295 = vadd.f32 0.0, %v294
    %296 = vdwg.mxu0
    %v298 = vsel %vm135, %v110, 0
    %300 = vmatpush.msra.mxu0 0.0
    %301 = vmatpush.msra.mxu0 0.0
    %302 = vmatpush.msra.mxu0 0.0
    %303 = vmatpush.msra.mxu0 0.0
    %304 = vmatpush.msra.mxu0 0.0
    %305 = vmatpush.msra.mxu0 0.0
    %306 = vmatpush.msra.mxu0 0.0
    %307 = vmatpush.msra.mxu0 0.0
    %308 = vmatpush.msra.mxu0 0.0
    %309 = vmatpush.msra.mxu0 0.0
    %310 = vmatpush.msra.mxu0 0.0
    %311 = vmatpush.msra.mxu0 0.0
    %312 = vmatpush.msra.mxu0 0.0
    %313 = vmatpush.msra.mxu0 0.0
    %314 = vmatpush.msra.mxu0 0.0
    %315 = vmatpush.msra.mxu0 %v118
    %316 = vmatmul.f32.gmra.mxu0 %v298
    %v317 = vpop.f32.mrf.mxu0
    %v318 = vadd.f32 0.0, %v317
    %319 = vdwg.mxu0
    %v320 = vadd.f32 %v127, %v157
    %v321 = vadd.f32 %v128, %v180
    %v322 = vadd.f32 %v129, %v203
    %v323 = vadd.f32 %v130, %v226
    %v324 = vadd.f32 %v131, %v249
    %v325 = vadd.f32 %v132, %v272
    %v326 = vadd.f32 %v133, %v295
    %v327 = vadd.f32 %v134, %v318
    %vm328 = vcmask 253952
    %329 = vst.msk [vmem:[#allocation2] sm:$0x1] %vm328, %v320
    %330 = vst.msk [vmem:[#allocation2 + $0x1] sm:$0x1] %vm328, %v321
    %331 = vst.msk [vmem:[#allocation2 + $0x2] sm:$0x1] %vm328, %v322
    %332 = vst.msk [vmem:[#allocation2 + $0x3] sm:$0x1] %vm328, %v323
    %333 = vst.msk [vmem:[#allocation2 + $0x4] sm:$0x1] %vm328, %v324
    %334 = vst.msk [vmem:[#allocation2 + $0x5] sm:$0x1] %vm328, %v325
    %335 = vst.msk [vmem:[#allocation2 + $0x6] sm:$0x1] %vm328, %v326
    %336 = vst.msk [vmem:[#allocation2 + $0x7] sm:$0x1] %vm328, %v327
    %v337 = vld [vmem:[#allocation3] sm:$0x1]
    %v338 = vld [vmem:[#allocation3 + $0x1] sm:$0x1]
    %v339 = vld [vmem:[#allocation3 + $0x2] sm:$0x1]
    %v340 = vld [vmem:[#allocation3 + $0x3] sm:$0x1]
    %v341 = vld [vmem:[#allocation3 + $0x4] sm:$0x1]
    %v342 = vld [vmem:[#allocation3 + $0x5] sm:$0x1]
    %v343 = vld [vmem:[#allocation3 + $0x6] sm:$0x1]
    %v344 = vld [vmem:[#allocation3 + $0x7] sm:$0x1]
    %345 = vmatpush.msra.mxu0 0.0
    %346 = vmatpush.msra.mxu0 0.0
    %347 = vmatpush.msra.mxu0 0.0
    %348 = vmatpush.msra.mxu0 0.0
    %349 = vmatpush.msra.mxu0 0.0
    %350 = vmatpush.msra.mxu0 0.0
    %351 = vmatpush.msra.mxu0 0.0
    %352 = vmatpush.msra.mxu0 0.0
    %353 = vmatpush.msra.mxu0 0.0
    %354 = vmatpush.msra.mxu0 0.0
    %355 = vmatpush.msra.mxu0 0.0
    %356 = vmatpush.msra.mxu0 0.0
    %357 = vmatpush.msra.mxu0 0.0
    %358 = vmatpush.msra.mxu0 0.0
    %359 = vmatpush.msra.mxu0 0.0
    %360 = vmatpush.msra.mxu0 %v119
    %361 = vmatmul.f32.gmra.mxu0 %v137
    %v362 = vpop.f32.mrf.mxu0
    %v363 = vadd.f32 0.0, %v362
    %364 = vdwg.mxu0
    %365 = vmatpush.msra.mxu0 0.0
    %366 = vmatpush.msra.mxu0 0.0
    %367 = vmatpush.msra.mxu0 0.0
    %368 = vmatpush.msra.mxu0 0.0
    %369 = vmatpush.msra.mxu0 0.0
    %370 = vmatpush.msra.mxu0 0.0
    %371 = vmatpush.msra.mxu0 0.0
    %372 = vmatpush.msra.mxu0 0.0
    %373 = vmatpush.msra.mxu0 0.0
    %374 = vmatpush.msra.mxu0 0.0
    %375 = vmatpush.msra.mxu0 0.0
    %376 = vmatpush.msra.mxu0 0.0
    %377 = vmatpush.msra.mxu0 0.0
    %378 = vmatpush.msra.mxu0 0.0
    %379 = vmatpush.msra.mxu0 0.0
    %380 = vmatpush.msra.mxu0 %v120
    %381 = vmatmul.f32.gmra.mxu0 %v160
    %v382 = vpop.f32.mrf.mxu0
    %v383 = vadd.f32 0.0, %v382
    %384 = vdwg.mxu0
    %385 = vmatpush.msra.mxu0 0.0
    %386 = vmatpush.msra.mxu0 0.0
    %387 = vmatpush.msra.mxu0 0.0
    %388 = vmatpush.msra.mxu0 0.0
    %389 = vmatpush.msra.mxu0 0.0
    %390 = vmatpush.msra.mxu0 0.0
    %391 = vmatpush.msra.mxu0 0.0
    %392 = vmatpush.msra.mxu0 0.0
    %393 = vmatpush.msra.mxu0 0.0
    %394 = vmatpush.msra.mxu0 0.0
    %395 = vmatpush.msra.mxu0 0.0
    %396 = vmatpush.msra.mxu0 0.0
    %397 = vmatpush.msra.mxu0 0.0
    %398 = vmatpush.msra.mxu0 0.0
    %399 = vmatpush.msra.mxu0 0.0
    %400 = vmatpush.msra.mxu0 %v121
    %401 = vmatmul.f32.gmra.mxu0 %v183
    %v402 = vpop.f32.mrf.mxu0
    %v403 = vadd.f32 0.0, %v402
    %404 = vdwg.mxu0
    %405 = vmatpush.msra.mxu0 0.0
    %406 = vmatpush.msra.mxu0 0.0
    %407 = vmatpush.msra.mxu0 0.0
    %408 = vmatpush.msra.mxu0 0.0
    %409 = vmatpush.msra.mxu0 0.0
    %410 = vmatpush.msra.mxu0 0.0
    %411 = vmatpush.msra.mxu0 0.0
    %412 = vmatpush.msra.mxu0 0.0
    %413 = vmatpush.msra.mxu0 0.0
    %414 = vmatpush.msra.mxu0 0.0
    %415 = vmatpush.msra.mxu0 0.0
    %416 = vmatpush.msra.mxu0 0.0
    %417 = vmatpush.msra.mxu0 0.0
    %418 = vmatpush.msra.mxu0 0.0
    %419 = vmatpush.msra.mxu0 0.0
    %420 = vmatpush.msra.mxu0 %v122
    %421 = vmatmul.f32.gmra.mxu0 %v206
    %v422 = vpop.f32.mrf.mxu0
    %v423 = vadd.f32 0.0, %v422
    %424 = vdwg.mxu0
    %425 = vmatpush.msra.mxu0 0.0
    %426 = vmatpush.msra.mxu0 0.0
    %427 = vmatpush.msra.mxu0 0.0
    %428 = vmatpush.msra.mxu0 0.0
    %429 = vmatpush.msra.mxu0 0.0
    %430 = vmatpush.msra.mxu0 0.0
    %431 = vmatpush.msra.mxu0 0.0
    %432 = vmatpush.msra.mxu0 0.0
    %433 = vmatpush.msra.mxu0 0.0
    %434 = vmatpush.msra.mxu0 0.0
    %435 = vmatpush.msra.mxu0 0.0
    %436 = vmatpush.msra.mxu0 0.0
    %437 = vmatpush.msra.mxu0 0.0
    %438 = vmatpush.msra.mxu0 0.0
    %439 = vmatpush.msra.mxu0 0.0
    %440 = vmatpush.msra.mxu0 %v123
    %441 = vmatmul.f32.gmra.mxu0 %v229
    %v442 = vpop.f32.mrf.mxu0
    %v443 = vadd.f32 0.0, %v442
    %444 = vdwg.mxu0
    %445 = vmatpush.msra.mxu0 0.0
    %446 = vmatpush.msra.mxu0 0.0
    %447 = vmatpush.msra.mxu0 0.0
    %448 = vmatpush.msra.mxu0 0.0
    %449 = vmatpush.msra.mxu0 0.0
    %450 = vmatpush.msra.mxu0 0.0
    %451 = vmatpush.msra.mxu0 0.0
    %452 = vmatpush.msra.mxu0 0.0
    %453 = vmatpush.msra.mxu0 0.0
    %454 = vmatpush.msra.mxu0 0.0
    %455 = vmatpush.msra.mxu0 0.0
    %456 = vmatpush.msra.mxu0 0.0
    %457 = vmatpush.msra.mxu0 0.0
    %458 = vmatpush.msra.mxu0 0.0
    %459 = vmatpush.msra.mxu0 0.0
    %460 = vmatpush.msra.mxu0 %v124
    %461 = vmatmul.f32.gmra.mxu0 %v252
    %v462 = vpop.f32.mrf.mxu0
    %v463 = vadd.f32 0.0, %v462
    %464 = vdwg.mxu0
    %465 = vmatpush.msra.mxu0 0.0
    %466 = vmatpush.msra.mxu0 0.0
    %467 = vmatpush.msra.mxu0 0.0
    %468 = vmatpush.msra.mxu0 0.0
    %469 = vmatpush.msra.mxu0 0.0
    %470 = vmatpush.msra.mxu0 0.0
    %471 = vmatpush.msra.mxu0 0.0
    %472 = vmatpush.msra.mxu0 0.0
    %473 = vmatpush.msra.mxu0 0.0
    %474 = vmatpush.msra.mxu0 0.0
    %475 = vmatpush.msra.mxu0 0.0
    %476 = vmatpush.msra.mxu0 0.0
    %477 = vmatpush.msra.mxu0 0.0
    %478 = vmatpush.msra.mxu0 0.0
    %479 = vmatpush.msra.mxu0 0.0
    %480 = vmatpush.msra.mxu0 %v125
    %481 = vmatmul.f32.gmra.mxu0 %v275
    %v482 = vpop.f32.mrf.mxu0
    %v483 = vadd.f32 0.0, %v482
    %484 = vdwg.mxu0
    %485 = vmatpush.msra.mxu0 0.0
    %486 = vmatpush.msra.mxu0 0.0
    %487 = vmatpush.msra.mxu0 0.0
    %488 = vmatpush.msra.mxu0 0.0
    %489 = vmatpush.msra.mxu0 0.0
    %490 = vmatpush.msra.mxu0 0.0
    %491 = vmatpush.msra.mxu0 0.0
    %492 = vmatpush.msra.mxu0 0.0
    %493 = vmatpush.msra.mxu0 0.0
    %494 = vmatpush.msra.mxu0 0.0
    %495 = vmatpush.msra.mxu0 0.0
    %496 = vmatpush.msra.mxu0 0.0
    %497 = vmatpush.msra.mxu0 0.0
    %498 = vmatpush.msra.mxu0 0.0
    %499 = vmatpush.msra.mxu0 0.0
    %500 = vmatpush.msra.mxu0 %v126
    %501 = vmatmul.f32.gmra.mxu0 %v298
    %v502 = vpop.f32.mrf.mxu0
    %v503 = vadd.f32 0.0, %v502
    %504 = vdwg.mxu0
    %v505 = vadd.f32 %v337, %v363
    %v506 = vadd.f32 %v338, %v383
    %v507 = vadd.f32 %v339, %v403
    %v508 = vadd.f32 %v340, %v423
    %v509 = vadd.f32 %v341, %v443
    %v510 = vadd.f32 %v342, %v463
    %v511 = vadd.f32 %v343, %v483
    %v512 = vadd.f32 %v344, %v503
    %513 = vst.msk [vmem:[#allocation3] sm:$0x1] %vm328, %v505
    %514 = vst.msk [vmem:[#allocation3 + $0x1] sm:$0x1] %vm328, %v506
    %515 = vst.msk [vmem:[#allocation3 + $0x2] sm:$0x1] %vm328, %v507
    %516 = vst.msk [vmem:[#allocation3 + $0x3] sm:$0x1] %vm328, %v508
    %517 = vst.msk [vmem:[#allocation3 + $0x4] sm:$0x1] %vm328, %v509
    %518 = vst.msk [vmem:[#allocation3 + $0x5] sm:$0x1] %vm328, %v510
    %519 = vst.msk [vmem:[#allocation3 + $0x6] sm:$0x1] %vm328, %v511
    %520 = vst.msk [vmem:[#allocation3 + $0x7] sm:$0x1] %vm328, %v512
    %v521 = vld [vmem:[#allocation4] sm:$0x1]
    %v522 = vld [vmem:[#allocation4 + $0x1] sm:$0x1]
    %v523 = vld [vmem:[#allocation4 + $0x2] sm:$0x1]
    %v524 = vld [vmem:[#allocation4 + $0x3] sm:$0x1]
    %v525 = vld [vmem:[#allocation4 + $0x4] sm:$0x1]
    %v526 = vld [vmem:[#allocation4 + $0x5] sm:$0x1]
    %v527 = vld [vmem:[#allocation4 + $0x6] sm:$0x1]
    %v528 = vld [vmem:[#allocation4 + $0x7] sm:$0x1]
    %vm529 = vcmask 57344
    %v530 = vsel %vm529, %v103, 0.0
    %531 = vadd.xlane.f32.xlu0 %v530
    %v532 = vpop.xlane.xlu0 %531
    %v533 = vsel %vm529, %v104, 0.0
    %534 = vadd.xlane.f32.xlu0 %v533
    %v535 = vpop.xlane.xlu0 %534
    %v536 = vsel %vm529, %v105, 0.0
    %537 = vadd.xlane.f32.xlu0 %v536
    %v538 = vpop.xlane.xlu0 %537
    %v539 = vsel %vm529, %v106, 0.0
    %540 = vadd.xlane.f32.xlu0 %v539
    %v541 = vpop.xlane.xlu0 %540
    %v542 = vsel %vm529, %v107, 0.0
    %543 = vadd.xlane.f32.xlu0 %v542
    %v544 = vpop.xlane.xlu0 %543
    %v545 = vsel %vm529, %v108, 0.0
    %546 = vadd.xlane.f32.xlu0 %v545
    %v547 = vpop.xlane.xlu0 %546
    %v548 = vsel %vm529, %v109, 0.0
    %549 = vadd.xlane.f32.xlu0 %v548
    %v550 = vpop.xlane.xlu0 %549
    %v551 = vsel %vm529, %v110, 0.0
    %552 = vadd.xlane.f32.xlu0 %v551
    %v553 = vpop.xlane.xlu0 %552
    %v554 = vadd.f32 %v521, %v532
    %v555 = vadd.f32 %v522, %v535
    %v556 = vadd.f32 %v523, %v538
    %v557 = vadd.f32 %v524, %v541
    %v558 = vadd.f32 %v525, %v544
    %v559 = vadd.f32 %v526, %v547
    %v560 = vadd.f32 %v527, %v550
    %v561 = vadd.f32 %v528, %v553
    %vm562 = vcmask 0
    %563 = vst.msk [vmem:[#allocation4] sm:$0x1] %vm562, %v554
    %564 = vst.msk [vmem:[#allocation4 + $0x1] sm:$0x1] %vm562, %v555
    %565 = vst.msk [vmem:[#allocation4 + $0x2] sm:$0x1] %vm562, %v556
    %566 = vst.msk [vmem:[#allocation4 + $0x3] sm:$0x1] %vm562, %v557
    %567 = vst.msk [vmem:[#allocation4 + $0x4] sm:$0x1] %vm562, %v558
    %568 = vst.msk [vmem:[#allocation4 + $0x5] sm:$0x1] %vm562, %v559
    %569 = vst.msk [vmem:[#allocation4 + $0x6] sm:$0x1] %vm562, %v560
    %570 = vst.msk [vmem:[#allocation4 + $0x7] sm:$0x1] %vm562, %v561
    // Predicated region
    $region30: #{tpu_custom_call.1} parent=1 // pred_check
      %p571 = pneg %p65
    $region31: #{tpu_custom_call.1} parent=1 // pred_check_branch
      %573 = sbr.rel (%p571) target = $region33
    $region32: #{tpu_custom_call.1} parent=1 // pred_region
      %v574 = vld [vmem:[#allocation4] sm:$0x1]
      %v575 = vld [vmem:[#allocation4 + $0x1] sm:$0x1]
      %v576 = vld [vmem:[#allocation4 + $0x2] sm:$0x1]
      %v577 = vld [vmem:[#allocation4 + $0x3] sm:$0x1]
      %v578 = vld [vmem:[#allocation4 + $0x4] sm:$0x1]
      %v579 = vld [vmem:[#allocation4 + $0x5] sm:$0x1]
      %v580 = vld [vmem:[#allocation4 + $0x6] sm:$0x1]
      %v581 = vld [vmem:[#allocation4 + $0x7] sm:$0x1]
      %v582 = vrcp.pop %v574
      %v583 = vmul.f32 %v574, %v582
      %v584 = vsub.f32 1.0, %v583
      %v585 = vmul.f32 %v582, %v584
      %v586 = vadd.f32 %v582, %v585
      %vm587 = vweird.f32 %v574
      %vm588 = vweird.f32 %v582
      %vm589 = vmor %vm587, %vm588
      %v590 = vsel %vm589, %v582, %v586
      %v591 = vand.u32 2147483647, %v574
      %vm592 = vcmp.eq.f32.partialorder %v591, 8.507059e+37
      %v593 = vand.u32 %v574, 2147483648
      %v594 = vor.u32 1.1754944e-38, %v593
      %v595 = vsel %vm592, %v594, %v590
      %v596 = vmul.f32 1.0, %v595
      %v597 = vrcp.pop %v575
      %v598 = vmul.f32 %v575, %v597
      %v599 = vsub.f32 1.0, %v598
      %v600 = vmul.f32 %v597, %v599
      %v601 = vadd.f32 %v597, %v600
      %vm602 = vweird.f32 %v575
      %vm603 = vweird.f32 %v597
      %vm604 = vmor %vm602, %vm603
      %v605 = vsel %vm604, %v597, %v601
      %v606 = vand.u32 2147483647, %v575
      %vm607 = vcmp.eq.f32.partialorder %v606, 8.507059e+37
      %v608 = vand.u32 %v575, 2147483648
      %v609 = vor.u32 1.1754944e-38, %v608
      %v610 = vsel %vm607, %v609, %v605
      %v611 = vmul.f32 1.0, %v610
      %v612 = vrcp.pop %v576
      %v613 = vmul.f32 %v576, %v612
      %v614 = vsub.f32 1.0, %v613
      %v615 = vmul.f32 %v612, %v614
      %v616 = vadd.f32 %v612, %v615
      %vm617 = vweird.f32 %v576
      %vm618 = vweird.f32 %v612
      %vm619 = vmor %vm617, %vm618
      %v620 = vsel %vm619, %v612, %v616
      %v621 = vand.u32 2147483647, %v576
      %vm622 = vcmp.eq.f32.partialorder %v621, 8.507059e+37
      %v623 = vand.u32 %v576, 2147483648
      %v624 = vor.u32 1.1754944e-38, %v623
      %v625 = vsel %vm622, %v624, %v620
      %v626 = vmul.f32 1.0, %v625
      %v627 = vrcp.pop %v577
      %v628 = vmul.f32 %v577, %v627
      %v629 = vsub.f32 1.0, %v628
      %v630 = vmul.f32 %v627, %v629
      %v631 = vadd.f32 %v627, %v630
      %vm632 = vweird.f32 %v577
      %vm633 = vweird.f32 %v627
      %vm634 = vmor %vm632, %vm633
      %v635 = vsel %vm634, %v627, %v631
      %v636 = vand.u32 2147483647, %v577
      %vm637 = vcmp.eq.f32.partialorder %v636, 8.507059e+37
      %v638 = vand.u32 %v577, 2147483648
      %v639 = vor.u32 1.1754944e-38, %v638
      %v640 = vsel %vm637, %v639, %v635
      %v641 = vmul.f32 1.0, %v640
      %v642 = vrcp.pop %v578
      %v643 = vmul.f32 %v578, %v642
      %v644 = vsub.f32 1.0, %v643
      %v645 = vmul.f32 %v642, %v644
      %v646 = vadd.f32 %v642, %v645
      %vm647 = vweird.f32 %v578
      %vm648 = vweird.f32 %v642
      %vm649 = vmor %vm647, %vm648
      %v650 = vsel %vm649, %v642, %v646
      %v651 = vand.u32 2147483647, %v578
      %vm652 = vcmp.eq.f32.partialorder %v651, 8.507059e+37
      %v653 = vand.u32 %v578, 2147483648
      %v654 = vor.u32 1.1754944e-38, %v653
      %v655 = vsel %vm652, %v654, %v650
      %v656 = vmul.f32 1.0, %v655
      %v657 = vrcp.pop %v579
      %v658 = vmul.f32 %v579, %v657
      %v659 = vsub.f32 1.0, %v658
      %v660 = vmul.f32 %v657, %v659
      %v661 = vadd.f32 %v657, %v660
      %vm662 = vweird.f32 %v579
      %vm663 = vweird.f32 %v657
      %vm664 = vmor %vm662, %vm663
      %v665 = vsel %vm664, %v657, %v661
      %v666 = vand.u32 2147483647, %v579
      %vm667 = vcmp.eq.f32.partialorder %v666, 8.507059e+37
      %v668 = vand.u32 %v579, 2147483648
      %v669 = vor.u32 1.1754944e-38, %v668
      %v670 = vsel %vm667, %v669, %v665
      %v671 = vmul.f32 1.0, %v670
      %v672 = vrcp.pop %v580
      %v673 = vmul.f32 %v580, %v672
      %v674 = vsub.f32 1.0, %v673
      %v675 = vmul.f32 %v672, %v674
      %v676 = vadd.f32 %v672, %v675
      %vm677 = vweird.f32 %v580
      %vm678 = vweird.f32 %v672
      %vm679 = vmor %vm677, %vm678
      %v680 = vsel %vm679, %v672, %v676
      %v681 = vand.u32 2147483647, %v580
      %vm682 = vcmp.eq.f32.partialorder %v681, 8.507059e+37
      %v683 = vand.u32 %v580, 2147483648
      %v684 = vor.u32 1.1754944e-38, %v683
      %v685 = vsel %vm682, %v684, %v680
      %v686 = vmul.f32 1.0, %v685
      %v687 = vrcp.pop %v581
      %v688 = vmul.f32 %v581, %v687
      %v689 = vsub.f32 1.0, %v688
      %v690 = vmul.f32 %v687, %v689
      %v691 = vadd.f32 %v687, %v690
      %vm692 = vweird.f32 %v581
      %vm693 = vweird.f32 %v687
      %vm694 = vmor %vm692, %vm693
      %v695 = vsel %vm694, %v687, %v691
      %v696 = vand.u32 2147483647, %v581
      %vm697 = vcmp.eq.f32.partialorder %v696, 8.507059e+37
      %v698 = vand.u32 %v581, 2147483648
      %v699 = vor.u32 1.1754944e-38, %v698
      %v700 = vsel %vm697, %v699, %v695
      %v701 = vmul.f32 1.0, %v700
      %v702 = vld [vmem:[#allocation2] sm:$0x1]
      %v703 = vld [vmem:[#allocation2 + $0x1] sm:$0x1]
      %v704 = vld [vmem:[#allocation2 + $0x2] sm:$0x1]
      %v705 = vld [vmem:[#allocation2 + $0x3] sm:$0x1]
      %v706 = vld [vmem:[#allocation2 + $0x4] sm:$0x1]
      %v707 = vld [vmem:[#allocation2 + $0x5] sm:$0x1]
      %v708 = vld [vmem:[#allocation2 + $0x6] sm:$0x1]
      %v709 = vld [vmem:[#allocation2 + $0x7] sm:$0x1]
      %711 = vset.pattern.permute.xlu0 0
      %712 = vperm.xlu0 %711, %v596
      %v713 = vpop.permute.xlu0 %712
      %v715 = vperm.slane %v713, 0
      %717 = vset.pattern.permute.xlu0 0
      %718 = vperm.xlu0 %717, %v611
      %v719 = vpop.permute.xlu0 %718
      %v721 = vperm.slane %v719, 0
      %723 = vset.pattern.permute.xlu0 0
      %724 = vperm.xlu0 %723, %v626
      %v725 = vpop.permute.xlu0 %724
      %v727 = vperm.slane %v725, 0
      %729 = vset.pattern.permute.xlu0 0
      %730 = vperm.xlu0 %729, %v641
      %v731 = vpop.permute.xlu0 %730
      %v733 = vperm.slane %v731, 0
      %735 = vset.pattern.permute.xlu0 0
      %736 = vperm.xlu0 %735, %v656
      %v737 = vpop.permute.xlu0 %736
      %v739 = vperm.slane %v737, 0
      %741 = vset.pattern.permute.xlu0 0
      %742 = vperm.xlu0 %741, %v671
      %v743 = vpop.permute.xlu0 %742
      %v745 = vperm.slane %v743, 0
      %747 = vset.pattern.permute.xlu0 0
      %748 = vperm.xlu0 %747, %v686
      %v749 = vpop.permute.xlu0 %748
      %v751 = vperm.slane %v749, 0
      %753 = vset.pattern.permute.xlu0 0
      %754 = vperm.xlu0 %753, %v701
      %v755 = vpop.permute.xlu0 %754
      %v757 = vperm.slane %v755, 0
      %v758 = vmul.f32 %v702, %v715
      %v759 = vmul.f32 %v703, %v721
      %v760 = vmul.f32 %v704, %v727
      %v761 = vmul.f32 %v705, %v733
      %v762 = vmul.f32 %v706, %v739
      %v763 = vmul.f32 %v707, %v745
      %v764 = vmul.f32 %v708, %v751
      %v765 = vmul.f32 %v709, %v757
      %766 = vst.msk [vmem:[#allocation11] sm:$0x1] %vm328, %v758
      %767 = vst.msk [vmem:[#allocation11 + $0x1] sm:$0x1] %vm328, %v759
      %768 = vst.msk [vmem:[#allocation11 + $0x2] sm:$0x1] %vm328, %v760
      %769 = vst.msk [vmem:[#allocation11 + $0x3] sm:$0x1] %vm328, %v761
      %770 = vst.msk [vmem:[#allocation11 + $0x4] sm:$0x1] %vm328, %v762
      %771 = vst.msk [vmem:[#allocation11 + $0x5] sm:$0x1] %vm328, %v763
      %772 = vst.msk [vmem:[#allocation11 + $0x6] sm:$0x1] %vm328, %v764
      %773 = vst.msk [vmem:[#allocation11 + $0x7] sm:$0x1] %vm328, %v765
      %v774 = vld [vmem:[#allocation3] sm:$0x1]
      %v775 = vld [vmem:[#allocation3 + $0x1] sm:$0x1]
      %v776 = vld [vmem:[#allocation3 + $0x2] sm:$0x1]
      %v777 = vld [vmem:[#allocation3 + $0x3] sm:$0x1]
      %v778 = vld [vmem:[#allocation3 + $0x4] sm:$0x1]
      %v779 = vld [vmem:[#allocation3 + $0x5] sm:$0x1]
      %v780 = vld [vmem:[#allocation3 + $0x6] sm:$0x1]
      %v781 = vld [vmem:[#allocation3 + $0x7] sm:$0x1]
      %v782 = vmul.f32 %v774, %v715
      %v783 = vmul.f32 %v775, %v721
      %v784 = vmul.f32 %v776, %v727
      %v785 = vmul.f32 %v777, %v733
      %v786 = vmul.f32 %v778, %v739
      %v787 = vmul.f32 %v779, %v745
      %v788 = vmul.f32 %v780, %v751
      %v789 = vmul.f32 %v781, %v757
      %790 = vst.msk [vmem:[#allocation12] sm:$0x1] %vm328, %v782
      %791 = vst.msk [vmem:[#allocation12 + $0x1] sm:$0x1] %vm328, %v783
      %792 = vst.msk [vmem:[#allocation12 + $0x2] sm:$0x1] %vm328, %v784
      %793 = vst.msk [vmem:[#allocation12 + $0x3] sm:$0x1] %vm328, %v785
      %794 = vst.msk [vmem:[#allocation12 + $0x4] sm:$0x1] %vm328, %v786
      %795 = vst.msk [vmem:[#allocation12 + $0x5] sm:$0x1] %vm328, %v787
      %796 = vst.msk [vmem:[#allocation12 + $0x6] sm:$0x1] %vm328, %v788
      %797 = vst.msk [vmem:[#allocation12 + $0x7] sm:$0x1] %vm328, %v789
    $region33: #{tpu_custom_call.1} parent=1 // pred_fallthru
      _
    // Predicated region
    $region34: #{tpu_custom_call.1} parent=1 // pred_check
      _
    $region35: #{tpu_custom_call.1} parent=1 // pred_check_branch
      %799 = sbr.rel (0) target = $region37
    $region36: #{tpu_custom_call.1} parent=1 // pred_region
      %801 = vsyncadd [#allocation7], 0
      %s802 = sshll.u32 [#allocation11], 4
      %s803 = int_to_ptr.vmem [resolvable:$true] %s802
      %s804 = sshll.u32 %s3, 4
      %s805 = int_to_ptr.hbm [resolvable:$true] %s804
      %810 = dma.vmem_to_hbm [thread:$0]  %s803, 128, %s805, [#allocation7], 16, 16, 1
    $region37: #{tpu_custom_call.1} parent=1 // pred_fallthru
      _
    // Predicated region
    $region38: #{tpu_custom_call.1} parent=1 // pred_check
      _
    $region39: #{tpu_custom_call.1} parent=1 // pred_check_branch
      %812 = sbr.rel (0) target = $region41
    $region40: #{tpu_custom_call.1} parent=1 // pred_region
      %814 = vsyncadd [#allocation13], 0
      %s815 = sshll.u32 [#allocation12], 4
      %s816 = int_to_ptr.vmem [resolvable:$true] %s815
      %s817 = sshll.u32 %s4, 4
      %s818 = int_to_ptr.hbm [resolvable:$true] %s817
      %823 = dma.vmem_to_hbm [thread:$0]  %s816, 128, %s818, [#allocation13], 16, 16, 1
    $region41: #{tpu_custom_call.1} parent=1 // pred_fallthru
      _
    // Predicated region
    $region42: #{tpu_custom_call.1} parent=1 // pred_check
      _
    $region43: #{tpu_custom_call.1} parent=1 // pred_check_branch
      %825 = sbr.rel (0) target = $region45
    $region44: #{tpu_custom_call.1} parent=1 // pred_region
      %827 = dma.done [#allocation7], 128
    $region45: #{tpu_custom_call.1} parent=1 // pred_fallthru
      _
    // Predicated region
    $region46: #{tpu_custom_call.1} parent=1 // pred_check
      _
    $region47: #{tpu_custom_call.1} parent=1 // pred_check_branch
      %829 = sbr.rel (0) target = $region49
    $region48: #{tpu_custom_call.1} parent=1 // pred_region
      %831 = dma.done [#allocation13], 128
    $region49: #{tpu_custom_call.1} parent=1 // pred_fallthru
      _
    %832 = vsyncpa [#allocation6], 1
    %833 = vsyncpa [#allocation9], 1
    %834 = vsyncpa [#allocation7], 1
    %835 = vsyncpa [#allocation13], 1

</llo_original>
